<compile_context>
chip_gen: v7x
topology: tpu7x:2x2x1
jax: 0.10.0
libtpu: 0.0.40
codegen_flags: <defaults>
</compile_context>

<pallas_src>
import jax
import jax.numpy as jnp
import numpy as np
from jax import lax
from jax.experimental import pallas as pl
from jax.experimental.pallas import tpu as pltpu

_HIGH = jax.lax.Precision.HIGHEST


def _dot(a, b):
    # high-precision f32 matmul for wrapper-side weight composition / GEMMs
    return jnp.dot(a, b, precision=_HIGH)


# ----------------------------------------------------------------------------
# EnhancedTMDO kernel: temporal first difference (lap output dropped — it was
# computed, written to HBM and then discarded by LSTMBranch.forward).
# ----------------------------------------------------------------------------
# TODO(synk): EnhancedTMDO's exact definition is unavailable; implemented as
# the first temporal difference with a zero at t=0.
def _tmdo_kernel(x_ref, dx_ref):
    x = x_ref[...]                                    # (S, B, Din), time-major
    x_prev = jnp.concatenate([x[:1], x[:-1]], axis=0)
    dx_ref[...] = x - x_prev                          # row 0 is exactly zero


# ----------------------------------------------------------------------------
# Recurrent kernel: one grid step == T timesteps (chunked), state in VMEM
# ----------------------------------------------------------------------------
def _lstm_recurrent_kernel(ge_ref, decay_ref, whh_ref, feat_ref, h_scr, c_scr):
    """ge_ref    : (T, Bp, 5H)  precomputed x/event pre-activations
                                [i | f | g | o | event] (h-independent parts)
       decay_ref : (T, Bp, 1)   exp(-time_distance)
       whh_ref   : (H, 5H)      fused recurrent weights [wh_i|wh_f|wh_g|wh_o|whg]
       feat_ref  : (T, Bp, H)   hidden states (output)
       h_scr/c_scr : (Bp, H)    recurrent state carried across grid steps
    """
    T = ge_ref.shape[0]
    H = h_scr.shape[-1]

    @pl.when(pl.program_id(0) == 0)
    def _():
        h_scr[...] = jnp.zeros_like(h_scr)
        c_scr[...] = jnp.zeros_like(c_scr)

    whh = whh_ref[...]   # hoisted: loaded once per grid step

    def step(t, carry):
        h = h_scr[...]
        c = c_scr[...]
        # Single fused MXU push per timestep (instead of 5 tiny N=H matmuls).
        gh = jnp.dot(h, whh, preferred_element_type=jnp.float32)   # (Bp, 5H)
        pre = ge_ref[t] + gh
        i_g = jax.nn.sigmoid(pre[:, 0 * H:1 * H])
        f_g = jax.nn.sigmoid(pre[:, 1 * H:2 * H])
        g_g = jnp.tanh(pre[:, 2 * H:3 * H])
        o_g = jax.nn.sigmoid(pre[:, 3 * H:4 * H])
        # TODO(synk): EventProcessor modeled as tanh(linear(events)+linear(h))
        # scaled by exp(-time_distance); the per-type embedding table is unused.
        impact = jnp.tanh(pre[:, 4 * H:5 * H]) * decay_ref[t]
        c_new = f_g * c + i_g * g_g
        h_new = o_g * jnp.tanh(c_new) + impact
        h_scr[...] = h_new
        c_scr[...] = c_new
        feat_ref[t] = h_new
        return carry

    lax.fori_loop(0, T, step, 0, unroll=True)


# ----------------------------------------------------------------------------
# wrapper
# ----------------------------------------------------------------------------
def lstm_branch_forward(params, x, events, time_distances, *,
                        time_chunk=8, gemm_dtype=jnp.float32):
    """x: (B,S,Din), events: (B,S,E), time_distances: (B,S) or (B,S,1).

    gemm_dtype: dtype of the hoisted batched-GEMM inputs/weights.  Kept f32 for
    bit-accuracy vs the reference; on v6e/v7x use jnp.bfloat16 (~2x MXU
    throughput on the hoisted GEMMs, accumulation stays f32).
    """
    B, S, Din = x.shape
    E = events.shape[-1]
    H = params["wp"].shape[1]
    if time_distances.ndim == 2:
        time_distances = time_distances[..., None]

    x = x.astype(jnp.float32)
    events = events.astype(jnp.float32)
    time_distances = time_distances.astype(jnp.float32)

    # -------------------------------------------------------------- TMDO pass
    # TODO(synk): for very large S*B*Din, tile this kernel over S/B instead of
    # whole-array VMEM residency (v7x has only 64 MiB VMEM).
    xt = jnp.transpose(x, (1, 0, 2))                         # (S, B, Din)
    dx_t = pl.pallas_call(
        _tmdo_kernel,
        out_shape=jax.ShapeDtypeStruct((S, B, Din), jnp.float32),
    )(xt)
    tmdo_features = jnp.transpose(dx_t, (1, 0, 2))           # (B, S, Din)

    # --------------------------- hoisted x/event pre-activations (one big GEMM)
    # gate_k(x) = (x@wp + bp)@wx[k] + x@wc[k] + bg[k]
    #           = x@(wp@wx[k] + wc[k]) + (bp@wx[k] + bg[k])
    wx_comb = jnp.concatenate(
        [_dot(params["wp"], params["wx"][k]) + params["wc"][k] for k in range(4)],
        axis=1)                                              # (Din, 4H)
    bg_comb = jnp.concatenate(
        [_dot(params["bp"], params["wx"][k]) + params["bg"][k] for k in range(4)],
        axis=1)                                              # (1, 4H)
    w_big = jnp.concatenate([
        jnp.concatenate([wx_comb, jnp.zeros((Din, H), jnp.float32)], axis=1),
        jnp.concatenate([jnp.zeros((E, 4 * H), jnp.float32), params["we"]], axis=1),
    ], axis=0)                                               # (Din+E, 5H)
    b_big = jnp.concatenate([bg_comb, params["be"]], axis=1)  # (1, 5H)

    inp = jnp.concatenate([x, events], axis=-1).reshape(B * S, Din + E)
    ge = jnp.dot(inp.astype(gemm_dtype), w_big.astype(gemm_dtype),
                 precision=_HIGH, preferred_element_type=jnp.float32) + b_big
    ge = ge.reshape(B, S, 5 * H)

    decay = jnp.exp(-time_distances)                         # (B, S, 1)

    # fused recurrent weights: one h-matmul per timestep inside the kernel
    whh = jnp.concatenate([params["wh"][k] for k in range(4)] + [params["whg"]],
                          axis=1)                            # (H, 5H)

    # -------------------- pad batch to x8 sublanes, seq to a multiple of chunk
    Bp = ((B + 7) // 8) * 8
    T = max(1, min(time_chunk, S))
    Sp = ((S + T - 1) // T) * T

    ge_t = jnp.transpose(ge, (1, 0, 2))                      # (S, B, 5H)
    decay_t = jnp.transpose(decay, (1, 0, 2))                # (S, B, 1)
    ge_t = jnp.pad(ge_t, ((0, Sp - S), (0, Bp - B), (0, 0)))
    decay_t = jnp.pad(decay_t, ((0, Sp - S), (0, Bp - B), (0, 0)))

    feats_t = pl.pallas_call(
        _lstm_recurrent_kernel,
        out_shape=jax.ShapeDtypeStruct((Sp, Bp, H), jnp.float32),
        grid_spec=pltpu.PrefetchScalarGridSpec(
            num_scalar_prefetch=0,
            grid=(Sp // T,),
            in_specs=[
                pl.BlockSpec((T, Bp, 5 * H), lambda i: (i, 0, 0)),   # gate pre-acts
                pl.BlockSpec((T, Bp, 1), lambda i: (i, 0, 0)),       # exp(-dist)
                pl.BlockSpec((H, 5 * H), lambda i: (0, 0)),          # fused wh/whg
            ],
            out_specs=pl.BlockSpec((T, Bp, H), lambda i: (i, 0, 0)),
            scratch_shapes=[pltpu.VMEM((Bp, H), jnp.float32),        # h state
                            pltpu.VMEM((Bp, H), jnp.float32)],       # c state
        ),
        compiler_params=pltpu.CompilerParams(
            dimension_semantics=("arbitrary",)),   # time axis is sequential
    )(ge_t, decay_t, whh)

    features = jnp.transpose(feats_t[:S, :B], (1, 0, 2))      # (B, S, H)

    # ----------------------------------------------- predictor post-pass GEMMs
    # Linear -> GELU (exact erf, = nn.GELU default) -> Dropout(eval) -> Linear
    flat = features.reshape(B * S, H).astype(gemm_dtype)
    hid = jax.nn.gelu(
        jnp.dot(flat, params["w1"].astype(gemm_dtype), precision=_HIGH,
                preferred_element_type=jnp.float32) + params["b1"],
        approximate=False)
    preds = (jnp.dot(hid.astype(gemm_dtype), params["w2"].astype(gemm_dtype),
                     precision=_HIGH, preferred_element_type=jnp.float32)
             + params["b2"]).reshape(B, S, 1)

    return preds, features, tmdo_features


# ----------------------------------------------------------------------------
# pure-JAX reference (module-faithful ordering of the same math) for validation
# ----------------------------------------------------------------------------
def _ref_forward(params, x, events, time_distances):
    B, S, Din = x.shape
    H = params["wp"].shape[1]
    if time_distances.ndim == 2:
        time_distances = time_distances[..., None]
    x = x.astype(jnp.float32)
    events = events.astype(jnp.float32)
    time_distances = time_distances.astype(jnp.float32)

    zero = jnp.zeros_like(x[:, :1])
    tmdo_features = jnp.concatenate([zero, x[:, 1:] - x[:, :-1]], axis=1)

    def step(carry, inp):
        h, c = carry
        cx, ce, cd = inp
        px = _dot(cx, params["wp"]) + params["bp"]
        impact = jnp.tanh(_dot(ce, params["we"]) + _dot(h, params["whg"])
                          + params["be"]) * jnp.exp(-cd)

        def g(k):
            return (_dot(px, params["wx"][k]) + _dot(h, params["wh"][k])
                    + _dot(cx, params["wc"][k]) + params["bg"][k])

        i_g, f_g = jax.nn.sigmoid(g(0)), jax.nn.sigmoid(g(1))
        g_g, o_g = jnp.tanh(g(2)), jax.nn.sigmoid(g(3))
        c_new = f_g * c + i_g * g_g
        h_new = o_g * jnp.tanh(c_new) + impact
        hid = jax.nn.gelu(_dot(h_new, params["w1"]) + params["b1"],
                          approximate=False)
        pred = _dot(hid, params["w2"]) + params["b2"]
        return (h_new, c_new), (pred, h_new)

    h0 = jnp.zeros((B, H), jnp.float32)
    c0 = jnp.zeros((B, H), jnp.float32)
    xs = (jnp.transpose(x, (1, 0, 2)),
          jnp.transpose(events, (1, 0, 2)),
          jnp.transpose(time_distances, (1, 0, 2)))
    _, (preds, feats) = lax.scan(step, (h0, c0), xs)
    return (jnp.transpose(preds, (1, 0, 2)),
            jnp.transpose(feats, (1, 0, 2)),
            tmdo_features)


# ----------------------------------------------------------------------------
# deterministic parameter construction
# ----------------------------------------------------------------------------
def init_params(key, input_dim, hidden_dim, event_dim, num_event_types):
    ks = jax.random.split(key, 12)
    H, Hh = hidden_dim, hidden_dim // 2

    def lin(k, fan_in, shape):
        return jax.random.normal(k, shape, jnp.float32) / jnp.sqrt(fan_in)

    params = dict(
        wp=lin(ks[0], input_dim, (input_dim, H)),
        bp=jnp.zeros((1, H), jnp.float32),
        we=lin(ks[1], event_dim, (event_dim, H)),
        be=jnp.zeros((1, H), jnp.float32),
        whg=lin(ks[2], H, (H, H)),
        wx=lin(ks[3], H, (4, H, H)),
        wh=lin(ks[4], H, (4, H, H)),
        wc=lin(ks[5], input_dim, (4, input_dim, H)),
        bg=jnp.zeros((4, 1, H), jnp.float32),
        w1=lin(ks[6], H, (H, Hh)),
        b1=jnp.zeros((1, Hh), jnp.float32),
        w2=lin(ks[7], Hh, (Hh, 1)),
        b2=jnp.zeros((1, 1), jnp.float32),
        # TODO(synk): event-type embedding table implied by num_event_types is
        # created for shape completeness but unused (events treated as features).
        event_type_emb=lin(ks[8], 1, (num_event_types, H)),
    )
    return params


# ----------------------------------------------------------------------------
if __name__ == "__main__":
    B, S = 4, 8
    input_dim, hidden_dim, event_dim, num_event_types = 16, 32, 8, 5

    key = jax.random.PRNGKey(0)
    k_p, k_x, k_e, k_d = jax.random.split(key, 4)

    params = init_params(k_p, input_dim, hidden_dim, event_dim, num_event_types)
    x = jax.random.normal(k_x, (B, S, input_dim), jnp.float32)
    events = jax.random.normal(k_e, (B, S, event_dim), jnp.float32)
    time_distances = jax.random.uniform(k_d, (B, S), jnp.float32, 0.0, 5.0)

    preds, feats, tmdo = lstm_branch_forward(params, x, events, time_distances)
    jax.block_until_ready((preds, feats, tmdo))

    ref_preds, ref_feats, ref_tmdo = _ref_forward(params, x, events, time_distances)
    assert preds.shape == (B, S, 1) and feats.shape == (B, S, hidden_dim)
    assert tmdo.shape == (B, S, input_dim)
    np.testing.assert_allclose(np.asarray(preds), np.asarray(ref_preds),
                               rtol=5e-4, atol=5e-4)
    np.testing.assert_allclose(np.asarray(feats), np.asarray(ref_feats),
                               rtol=5e-4, atol=5e-4)
    np.testing.assert_allclose(np.asarray(tmdo), np.asarray(ref_tmdo),
                               rtol=5e-4, atol=5e-4)

    print("KERNEL_OK")
</pallas_src>

<mosaic_0001>
module attributes {stable_mosaic.version = 11 : i64} {
  func.func @_tmdo_kernel(%arg0: memref<8x4x16xf32, #tpu.memory_space<vmem>>, %arg1: memref<8x4x16xf32, #tpu.memory_space<vmem>>) attributes {dimension_semantics = [], scalar_prefetch = 0 : i64, scratch_operands = 0 : i64, tpu.core_type = #tpu.core_type<tc>} {
    %c0 = arith.constant 0 : index
    %c0_0 = arith.constant 0 : index
    %c0_1 = arith.constant 0 : index
    %0 = vector.load %arg0[%c0, %c0_0, %c0_1] : memref<8x4x16xf32, #tpu.memory_space<vmem>>, vector<8x4x16xf32>
    %1 = vector.extract_strided_slice %0 {offsets = [0, 0, 0], sizes = [1, 4, 16], strides = [1, 1, 1]} : vector<8x4x16xf32> to vector<1x4x16xf32>
    %2 = vector.extract_strided_slice %0 {offsets = [0, 0, 0], sizes = [7, 4, 16], strides = [1, 1, 1]} : vector<8x4x16xf32> to vector<7x4x16xf32>
    %3 = tpu.concatenate %1, %2 in 0 : vector<1x4x16xf32>, vector<7x4x16xf32> -> vector<8x4x16xf32>
    %4 = arith.subf %0, %3 : vector<8x4x16xf32>
    %c0_2 = arith.constant 0 : index
    %c0_3 = arith.constant 0 : index
    %c0_4 = arith.constant 0 : index
    %5 = vector.load %arg1[%c0_2, %c0_3, %c0_4] : memref<8x4x16xf32, #tpu.memory_space<vmem>>, vector<8x4x16xf32>
    tpu.vector_store %arg1[%c0_2, %c0_3, %c0_4], %4 {strides = array<i32>} : memref<8x4x16xf32, #tpu.memory_space<vmem>>, vector<8x4x16xf32>,
    return
  }
}

</mosaic_0001>

<llo_original>
// kernel: tpu_custom_call.1
$region0: #{tpu_custom_call.1}
  #allocation0 [shape = 'u32[]', space=smem, size = 0x4, offset = 0x4, fixed_abs, tag = 'smem constant byte address 0x4 - core index']
  #allocation1 [shape = 'u32[144,128]{1,0:T(1,128)}', space=vmem, size = 0x12000, scoped, tag = 'internal scratch']
  %s0 = inlined_call_operand.hbm [shape: f32[8,4,16], index: 0, kind: input, shape index: {}]
  %s1 = inlined_call_operand.hbm [shape: f32[8,4,16], index: 1, kind: output, shape index: {}]
  %s2 = sld [smem:[#allocation0]]
  $region18: #{tpu_custom_call.1} parent=0
    _
  %s4 = ssub.s32 1, %s2
  %s5 = scalar_select 0, %s4, %s2
  $region1: #{tpu_custom_call.1} parent=0
    #allocation2 [shape = 'u8[16384]{0}', space=vmem, size = 0x4000, scoped, tag = 'input window, operand 0, single buffered']
    #allocation3 [shape = 's32[1]{0}', space=sflag, size = 0x4, scoped, tag = 'scoped memory for tpu_custom_call.1']
    #allocation4 [shape = 's32[1]{0}', space=sflag, size = 0x4, scoped, tag = 'scoped memory for tpu_custom_call.1']
    #allocation5 [shape = 'u8[16384]{0}', space=vmem, size = 0x4000, scoped, tag = 'output window, operand 0, single buffered']
    %6 = vsyncpa [#allocation3], 0
    %7 = vsyncpa [#allocation4], 0
    // Predicated region
    $region2: #{tpu_custom_call.1} parent=1 // pred_check
      _
    $region3: #{tpu_custom_call.1} parent=1 // pred_check_branch
      %9 = sbr.rel (0) target = $region5
    $region4: #{tpu_custom_call.1} parent=1 // pred_region
      %s11 = ssub.s32 512, 512
      %12 = vsyncadd [#allocation3], %s11
      %s13 = sshll.u32 [#allocation2], 4
      %s14 = int_to_ptr.vmem [resolvable:$true] %s13
      %19 = dma.hbm_to_vmem [thread:$0]  %s0, 512, %s14, [#allocation3], 64, 64, 4
    $region5: #{tpu_custom_call.1} parent=1 // pred_fallthru
      _
    // Predicated region
    $region6: #{tpu_custom_call.1} parent=1 // pred_check
      _
    $region7: #{tpu_custom_call.1} parent=1 // pred_check_branch
      %21 = sbr.rel (0) target = $region9
    $region8: #{tpu_custom_call.1} parent=1 // pred_region
      %22 = dma.done [#allocation3], 512
    $region9: #{tpu_custom_call.1} parent=1 // pred_fallthru
      _
    %v23 = vld [vmem:[#allocation2] sm:$0xf]
    %v24 = vld [vmem:[#allocation2 + $0x4] sm:$0xf]
    %v25 = vld [vmem:[#allocation2 + $0x8] sm:$0xf]
    %v26 = vld [vmem:[#allocation2 + $0xc] sm:$0xf]
    %v27 = vld [vmem:[#allocation2 + $0x10] sm:$0xf]
    %v28 = vld [vmem:[#allocation2 + $0x14] sm:$0xf]
    %v29 = vld [vmem:[#allocation2 + $0x18] sm:$0xf]
    %v30 = vld [vmem:[#allocation2 + $0x1c] sm:$0xf]
    %v31 = vsub.f32 %v23, %v23
    %v32 = vsub.f32 %v24, %v23
    %v33 = vsub.f32 %v25, %v24
    %v34 = vsub.f32 %v26, %v25
    %v35 = vsub.f32 %v27, %v26
    %v36 = vsub.f32 %v28, %v27
    %v37 = vsub.f32 %v29, %v28
    %v38 = vsub.f32 %v30, %v29
    %vm39 = vcmask 125952
    %40 = vst.msk [vmem:[#allocation5] sm:$0xf] %vm39, %v31
    %41 = vst.msk [vmem:[#allocation5 + $0x4] sm:$0xf] %vm39, %v32
    %42 = vst.msk [vmem:[#allocation5 + $0x8] sm:$0xf] %vm39, %v33
    %43 = vst.msk [vmem:[#allocation5 + $0xc] sm:$0xf] %vm39, %v34
    %44 = vst.msk [vmem:[#allocation5 + $0x10] sm:$0xf] %vm39, %v35
    %45 = vst.msk [vmem:[#allocation5 + $0x14] sm:$0xf] %vm39, %v36
    %46 = vst.msk [vmem:[#allocation5 + $0x18] sm:$0xf] %vm39, %v37
    %47 = vst.msk [vmem:[#allocation5 + $0x1c] sm:$0xf] %vm39, %v38
    // Predicated region
    $region10: #{tpu_custom_call.1} parent=1 // pred_check
      _
    $region11: #{tpu_custom_call.1} parent=1 // pred_check_branch
      %49 = sbr.rel (0) target = $region13
    $region12: #{tpu_custom_call.1} parent=1 // pred_region
      %s51 = ssub.s32 512, 512
      %52 = vsyncadd [#allocation4], %s51
      %s53 = sshll.u32 [#allocation5], 4
      %s54 = int_to_ptr.vmem [resolvable:$true] %s53
      %59 = dma.vmem_to_hbm [thread:$0]  %s54, 512, %s1, [#allocation4], 64, 64, 4
    $region13: #{tpu_custom_call.1} parent=1 // pred_fallthru
      _
    // Predicated region
    $region14: #{tpu_custom_call.1} parent=1 // pred_check
      _
    $region15: #{tpu_custom_call.1} parent=1 // pred_check_branch
      %61 = sbr.rel (0) target = $region17
    $region16: #{tpu_custom_call.1} parent=1 // pred_region
      %62 = dma.done [#allocation4], 512
    $region17: #{tpu_custom_call.1} parent=1 // pred_fallthru
      _
    %63 = vsyncpa [#allocation3], 1
    %64 = vsyncpa [#allocation4], 1

</llo_original>
